<compile_context>
chip_gen: v7x
topology: tpu7x:2x2x1
jax: 0.10.0
libtpu: 0.0.40
codegen_flags: <defaults>
</compile_context>

<pallas_src>
import math

import jax
import jax.numpy as jnp
from jax.experimental import pallas as pl
from jax.experimental.pallas import tpu as pltpu


# ----------------------------------------------------------------------------
# Parameter / buffer setup (plain JAX glue, mirrors nn.Module.__init__)
# ----------------------------------------------------------------------------
def make_sinusoidal_pe(max_len: int, hidden_dim: int,
                       dtype=jnp.float32) -> jnp.ndarray:
    """Builds the [1, max_len, hidden_dim] sinusoidal PE buffer."""
    position = jnp.arange(0, max_len, dtype=jnp.float32)[:, None]          # [L, 1]
    div_term = jnp.exp(
        jnp.arange(0, hidden_dim, 2, dtype=jnp.float32)
        * (-math.log(10000.0) / hidden_dim)
    )                                                                       # [H/2]
    angles = position * div_term                                            # [L, H/2]
    pe = jnp.zeros((max_len, hidden_dim), dtype=jnp.float32)
    pe = pe.at[:, 0::2].set(jnp.sin(angles))
    pe = pe.at[:, 1::2].set(jnp.cos(angles))
    return pe[None, :, :].astype(dtype)                                     # [1, L, H]


# ----------------------------------------------------------------------------
# Pallas kernels
# ----------------------------------------------------------------------------
def _add_pe_flat_kernel(x_ref, pe_ref, o_ref):
    # x_ref: (B, tF), pe_ref: (1, tF) -> sublane broadcast of pe across batch.
    o_ref[...] = (x_ref[...] + pe_ref[...]).astype(o_ref.dtype)


def _add_pe_expmap0_kernel(x_ref, pe_ref, o_ref):
    # Poincare-ball expmap0 with curvature c=1:
    #   expmap0(v) = tanh(||v||) * v / ||v||
    # TODO(synk): general curvature c and ball projection/clipping (||y|| < 1/sqrt(c))
    # as done by geoopt are not replicated here.
    v = (x_ref[...] + pe_ref[...]).astype(jnp.float32)
    sq = jnp.maximum(jnp.sum(v * v, axis=-1, keepdims=True), 1e-15)
    inv_norm = jax.lax.rsqrt(sq)            # EUP slot
    norm = sq * inv_norm                    # sqrt(sq) without a VPU divide
    scale = jnp.tanh(norm) * inv_norm       # EUP slot
    o_ref[...] = (v * scale).astype(o_ref.dtype)


# ----------------------------------------------------------------------------
# Wrapper
# ----------------------------------------------------------------------------
def _round_down_multiple(x: int, m: int) -> int:
    return (x // m) * m


def hyperbolic_positional_encoding(
    x: jnp.ndarray,
    pe: jnp.ndarray,
    *,
    apply_expmap: bool = False,
    dropout_p: float = 0.0,
) -> jnp.ndarray:
    """x: [B, S, H]; pe: [1, max_len, H]. Returns [B, S, H]."""
    # TODO(synk): dropout with p>0 (training mode) not wired up; would use
    # pltpu.prng_seed / pltpu.prng_random_bits in-kernel.
    assert dropout_p == 0.0

    B, S, H = x.shape
    _, max_len, Hp = pe.shape
    assert Hp == H and S <= max_len

    if pe.dtype != x.dtype:
        pe = pe.astype(x.dtype)             # dtype-matched pe (halves DMA for bf16)
    dtype_bytes = jnp.dtype(x.dtype).itemsize

    if not apply_expmap:
        # ---- lane-dense flattened add path ----
        F = S * H
        x_flat = x.reshape(B, F)
        pe_flat = pe.reshape(1, max_len * H)   # BlockSpec windows the first S*H elems

        # ~4 MiB per x block (double-buffered x + out + pe stays well under the
        # default scoped VMEM limit on every generation, incl. v7x's 64 MiB).
        target_bytes = 4 * 1024 * 1024
        tF = max(128, _round_down_multiple(target_bytes // (dtype_bytes * B), 128))
        if F <= tF:
            tF = F                             # full-extent block is always legal

        grid = (pl.cdiv(F, tF),)
        cost = pl.CostEstimate(
            flops=B * F,
            transcendentals=0,
            bytes_accessed=(2 * B * F + F) * dtype_bytes,
        )
        out_flat = pl.pallas_call(
            _add_pe_flat_kernel,
            out_shape=jax.ShapeDtypeStruct((B, F), x.dtype),
            grid_spec=pltpu.PrefetchScalarGridSpec(
                num_scalar_prefetch=0,
                grid=grid,
                in_specs=[
                    pl.BlockSpec((B, tF), lambda f: (0, f)),
                    pl.BlockSpec((1, tF), lambda f: (0, f)),
                ],
                out_specs=pl.BlockSpec((B, tF), lambda f: (0, f)),
            ),
            compiler_params=pltpu.CompilerParams(
                dimension_semantics=("parallel",)),
            cost_estimate=cost,
        )(x_flat, pe_flat)
        return out_flat.reshape(B, S, H)

    # ---- expmap0 path: keep [B, S, H] (row reduction over H) ----
    # Seq tile sized to ~2 MiB of activation rows; seq axis OUTER, batch INNER
    # so the pe tile is fetched once per seq tile (reused across batch steps).
    row_bytes = H * dtype_bytes
    target_bytes = 2 * 1024 * 1024
    tS = max(8, _round_down_multiple(target_bytes // row_bytes, 8))
    if S <= tS:
        tS = S

    grid = (pl.cdiv(S, tS), B)
    cost = pl.CostEstimate(
        flops=4 * B * S * H,
        transcendentals=2 * B * S,
        bytes_accessed=(2 * B * S * H + S * H) * dtype_bytes,
    )
    return pl.pallas_call(
        _add_pe_expmap0_kernel,
        out_shape=jax.ShapeDtypeStruct((B, S, H), x.dtype),
        grid_spec=pltpu.PrefetchScalarGridSpec(
            num_scalar_prefetch=0,
            grid=grid,
            in_specs=[
                pl.BlockSpec((1, tS, H), lambda s, b: (b, s, 0)),
                pl.BlockSpec((1, tS, H), lambda s, b: (0, s, 0)),  # indep. of batch
            ],
            out_specs=pl.BlockSpec((1, tS, H), lambda s, b: (b, s, 0)),
        ),
        compiler_params=pltpu.CompilerParams(
            dimension_semantics=("parallel", "parallel")),
        cost_estimate=cost,
    )(x, pe)


# ----------------------------------------------------------------------------
# Reference (pure JAX) for verification
# ----------------------------------------------------------------------------
def reference_forward(x, pe, apply_expmap=False):
    out = x + pe[:, : x.shape[1], :].astype(x.dtype)
    if apply_expmap:
        out = out.astype(jnp.float32)
        norm = jnp.sqrt(jnp.maximum(jnp.sum(out * out, -1, keepdims=True), 1e-15))
        out = (jnp.tanh(norm) / norm * out).astype(x.dtype)
    return out


if __name__ == "__main__":
    B, S, H = 2, 8, 32
    max_len = 64

    key = jax.random.PRNGKey(0)
    x = jax.random.normal(key, (B, S, H), dtype=jnp.float32)
    pe = make_sinusoidal_pe(max_len, H, dtype=jnp.float32)

    # Default module config: manifold=None, apply_expmap=False, dropout=0.0
    out = hyperbolic_positional_encoding(x, pe, apply_expmap=False)
    out = jax.block_until_ready(out)
    ref = reference_forward(x, pe, apply_expmap=False)
    assert out.shape == (B, S, H)
    assert jnp.allclose(out, ref, atol=1e-6, rtol=1e-6)

    # Optional hyperbolic path (manifold.expmap0 on Poincare ball, c=1)
    out_h = hyperbolic_positional_encoding(x, pe, apply_expmap=True)
    out_h = jax.block_until_ready(out_h)
    ref_h = reference_forward(x, pe, apply_expmap=True)
    assert jnp.allclose(out_h, ref_h, atol=1e-5, rtol=1e-5)

    print("KERNEL_OK")
</pallas_src>

<mosaic_0001>
module attributes {stable_mosaic.version = 11 : i64} {
  func.func @_add_pe_flat_kernel(%arg0: i32, %arg1: memref<2x256xf32, #tpu.memory_space<vmem>>, %arg2: memref<1x256xf32, #tpu.memory_space<vmem>>, %arg3: memref<2x256xf32, #tpu.memory_space<vmem>>) attributes {dimension_semantics = [#tpu.dimension_semantics<parallel>], iteration_bounds = array<i64: 1>, scalar_prefetch = 0 : i64, scratch_operands = 0 : i64, tpu.core_type = #tpu.core_type<tc>, window_params = [{transform_indices = @transform_0, window_bounds = array<i64: 2, 256>}, {transform_indices = @transform_1, window_bounds = array<i64: 1, 256>}, {transform_indices = @transform_2, window_bounds = array<i64: 2, 256>}]} {
    %c0 = arith.constant 0 : index
    %c0_0 = arith.constant 0 : index
    %0 = vector.load %arg1[%c0, %c0_0] : memref<2x256xf32, #tpu.memory_space<vmem>>, vector<2x256xf32>
    %c0_1 = arith.constant 0 : index
    %c0_2 = arith.constant 0 : index
    %1 = vector.load %arg2[%c0_1, %c0_2] : memref<1x256xf32, #tpu.memory_space<vmem>>, vector<1x256xf32>
    %2 = vector.broadcast %1 : vector<1x256xf32> to vector<2x256xf32>
    %3 = arith.addf %0, %2 : vector<2x256xf32>
    %c0_3 = arith.constant 0 : index
    %c0_4 = arith.constant 0 : index
    %4 = vector.load %arg3[%c0_3, %c0_4] : memref<2x256xf32, #tpu.memory_space<vmem>>, vector<2x256xf32>
    tpu.vector_store %arg3[%c0_3, %c0_4], %3 {strides = array<i32>} : memref<2x256xf32, #tpu.memory_space<vmem>>, vector<2x256xf32>,
    return
  }
  func.func @transform_0(%arg0: i32) -> (i32, i32) {
    %c0_i32 = arith.constant 0 : i32
    %c0_i32_0 = arith.constant 0 : i32
    return %c0_i32, %arg0 : i32, i32
  }
  func.func @transform_1(%arg0: i32) -> (i32, i32) {
    %c0_i32 = arith.constant 0 : i32
    %c0_i32_0 = arith.constant 0 : i32
    return %c0_i32, %arg0 : i32, i32
  }
  func.func @transform_2(%arg0: i32) -> (i32, i32) {
    %c0_i32 = arith.constant 0 : i32
    %c0_i32_0 = arith.constant 0 : i32
    return %c0_i32, %arg0 : i32, i32
  }
}

</mosaic_0001>

<llo_original>
// kernel: tpu_custom_call.1
$region0: #{tpu_custom_call.1}
  #allocation0 [shape = 'u32[]', space=smem, size = 0x4, offset = 0x4, fixed_abs, tag = 'smem constant byte address 0x4 - core index']
  #allocation1 [shape = 'u32[144,128]{1,0:T(1,128)}', space=vmem, size = 0x12000, scoped, tag = 'internal scratch']
  %s0 = inlined_call_operand.hbm [shape: f32[2,256], index: 0, kind: input, shape index: {}]
  %s1 = inlined_call_operand.hbm [shape: f32[1,2048], index: 1, kind: input, shape index: {}]
  %s2 = inlined_call_operand.hbm [shape: f32[2,256], index: 2, kind: output, shape index: {}]
  %s3 = sld [smem:[#allocation0]]
  $region26: #{tpu_custom_call.1} parent=0
    _
  %s5 = ssub.s32 1, %s3
  %s6 = scalar_select 0, %s5, %s3
  $region1: #{tpu_custom_call.1} parent=0
    #allocation2 [shape = 'u8[2048]{0}', space=vmem, size = 0x800, scoped, tag = 'input window, operand 0, single buffered']
    #allocation3 [shape = 's32[1]{0}', space=sflag, size = 0x4, scoped, tag = 'scoped memory for tpu_custom_call.1']
    #allocation4 [shape = 's32[1]{0}', space=sflag, size = 0x4, scoped, tag = 'scoped memory for tpu_custom_call.1']
    #allocation5 [shape = 'u8[1024]{0}', space=vmem, size = 0x400, scoped, tag = 'input window, operand 1, single buffered']
    #allocation6 [shape = 's32[1]{0}', space=sflag, size = 0x4, scoped, tag = 'scoped memory for tpu_custom_call.1']
    #allocation7 [shape = 'u8[2048]{0}', space=vmem, size = 0x800, scoped, tag = 'output window, operand 0, single buffered']
    %7 = vsyncpa [#allocation3], 0
    %8 = vsyncpa [#allocation6], 0
    %9 = vsyncpa [#allocation4], 0
    // Predicated region
    $region2: #{tpu_custom_call.1} parent=1 // pred_check
      _
    $region3: #{tpu_custom_call.1} parent=1 // pred_check_branch
      %11 = sbr.rel (0) target = $region5
    $region4: #{tpu_custom_call.1} parent=1 // pred_region
      %s13 = ssub.s32 64, 64
      %14 = vsyncadd [#allocation3], %s13
      %s16 = sshll.u32 [#allocation2], 4
      %s17 = int_to_ptr.vmem [resolvable:$true] %s16
      %19 = dma.hbm_to_vmem [thread:$0]  %s0, 64, %s17, [#allocation3]
    $region5: #{tpu_custom_call.1} parent=1 // pred_fallthru
      _
    // Predicated region
    $region6: #{tpu_custom_call.1} parent=1 // pred_check
      _
    $region7: #{tpu_custom_call.1} parent=1 // pred_check_branch
      %21 = sbr.rel (0) target = $region9
    $region8: #{tpu_custom_call.1} parent=1 // pred_region
      %s23 = ssub.s32 32, 32
      %24 = vsyncadd [#allocation6], %s23
      %s26 = sshll.u32 [#allocation5], 4
      %s27 = int_to_ptr.vmem [resolvable:$true] %s26
      %29 = dma.hbm_to_vmem [thread:$0]  %s1, 32, %s27, [#allocation6]
    $region9: #{tpu_custom_call.1} parent=1 // pred_fallthru
      _
    // Predicated region
    $region10: #{tpu_custom_call.1} parent=1 // pred_check
      _
    $region11: #{tpu_custom_call.1} parent=1 // pred_check_branch
      %31 = sbr.rel (0) target = $region13
    $region12: #{tpu_custom_call.1} parent=1 // pred_region
      %32 = dma.done [#allocation3], 64
    $region13: #{tpu_custom_call.1} parent=1 // pred_fallthru
      _
    // Predicated region
    $region14: #{tpu_custom_call.1} parent=1 // pred_check
      _
    $region15: #{tpu_custom_call.1} parent=1 // pred_check_branch
      %34 = sbr.rel (0) target = $region17
    $region16: #{tpu_custom_call.1} parent=1 // pred_region
      %35 = dma.done [#allocation6], 32
    $region17: #{tpu_custom_call.1} parent=1 // pred_fallthru
      _
    %v36 = vld [vmem:[#allocation2] sm:$0xf]
    %v37 = vld [vmem:[#allocation5] sm:$0x3]
    %v39 = vlaneseq
    %v40 = vshrl.u32 %v39, 7
    %v41 = vsub.s32 0, %v40
    %v42 = vrot.slane %v37, %v41
    %v43 = vlaneseq
    %v44 = vshrl.u32 %v43, 7
    %v45 = vsub.s32 1, %v44
    %v46 = vrot.slane %v37, %v45
    %v47 = vcombine.low %v42, %v46
    %v49 = vunpack.c.l.s4 1983009808
    %v50 = vunpack.c.0.s8 %v49
    %v51 = vlaneseq
    %v52 = vshrl.u32 %v51, 7
    %v53 = vsub.s32 %v50, %v52
    %v54 = vrot.slane %v47, %v53
    %v56 = vadd.f32 %v36, %v54
    %57 = vst [vmem:[#allocation7] sm:$0xf] %v56
    // Predicated region
    $region18: #{tpu_custom_call.1} parent=1 // pred_check
      _
    $region19: #{tpu_custom_call.1} parent=1 // pred_check_branch
      %59 = sbr.rel (0) target = $region21
    $region20: #{tpu_custom_call.1} parent=1 // pred_region
      %s61 = ssub.s32 64, 64
      %62 = vsyncadd [#allocation4], %s61
      %s64 = sshll.u32 [#allocation7], 4
      %s65 = int_to_ptr.vmem [resolvable:$true] %s64
      %67 = dma.vmem_to_hbm [thread:$0]  %s65, 64, %s2, [#allocation4]
    $region21: #{tpu_custom_call.1} parent=1 // pred_fallthru
      _
    // Predicated region
    $region22: #{tpu_custom_call.1} parent=1 // pred_check
      _
    $region23: #{tpu_custom_call.1} parent=1 // pred_check_branch
      %69 = sbr.rel (0) target = $region25
    $region24: #{tpu_custom_call.1} parent=1 // pred_region
      %70 = dma.done [#allocation4], 64
    $region25: #{tpu_custom_call.1} parent=1 // pred_fallthru
      _
    %71 = vsyncpa [#allocation3], 1
    %72 = vsyncpa [#allocation6], 1
    %73 = vsyncpa [#allocation4], 1

</llo_original>
